<compile_context>
chip_gen: v7x
topology: tpu7x:2x2x1
jax: 0.10.0
libtpu: 0.0.40
codegen_flags: <defaults>
</compile_context>

<pallas_src>
import functools

import jax
import jax.numpy as jnp
from jax.experimental import pallas as pl
from jax.experimental.pallas import tpu as pltpu


def _mhc_conv_kernel(x_ref, pos_ref, w0_ref, b0_ref, wc_ref, sh_ref,
                     o_ref, col_ref, *, seq_len, ksize, pad, num_blocks,
                     k_padded):
    """One grid step = `rows` whole sequences; everything VMEM resident.

    x_ref  : (rows, Cin)        input rows (tile holds whole sequences only)
    pos_ref: (rows, E)   int32  position of each row inside its sequence
    w0_ref : (Cin, E)           1x1 conv weight, BN scale folded in
    b0_ref : (1, E)      f32    folded BN shift after the 1x1 conv
    wc_ref : (nb, Kp, E)        im2col conv weights, K zero-padded to Kp=128m
    sh_ref : (nb, 1, E)  f32    folded conv-bias + BN shift per block
    o_ref  : (rows, E)          output
    col_ref: (rows, Kp)         im2col scratch (one aligned band store / tap)
    """
    E = w0_ref.shape[1]
    kE = ksize * E

    # 1x1 conv (+ folded BN): one MXU matmul, f32 accumulation + shift.
    h = jnp.dot(x_ref[...], w0_ref[...],
                preferred_element_type=jnp.float32) + b0_ref[...]

    # Row-position-in-sequence, hoisted out of the block loop (VPU compares
    # against it build the conv-padding / sequence-boundary validity masks).
    pos = pos_ref[...]

    # Zero only the K-padding lanes once; every real column band is fully
    # rewritten below each block (masked rows already carry zeros).
    if k_padded > kE:
        col_ref[:, kE:] = jnp.zeros(
            (col_ref.shape[0], k_padded - kE), col_ref.dtype)

    # TODO(synk): switch to lax.fori_loop with h as the carry if num_layers
    # grows (keeps vreg live ranges / code size flat); unrolled is fine at 2.
    for i in range(num_blocks):
        # im2col via k full-height band writes (review #1):
        #   roll h by (t - pad) rows (XLU), mask wrapped/padding rows (VPU),
        #   one aligned store per band -- no per-(batch, tap) masked stores.
        for t in range(ksize):
            s = t - pad                                  # tap offset in rows
            if s == 0:
                band = h
            else:
                amt = (pad - t) % h.shape[0]             # row r <- h[r + s]
                shifted = pltpu.roll(h, shift=amt, axis=0)
                valid = (pos < seq_len - s) if s > 0 else (pos >= -s)
                band = jnp.where(valid, shifted, 0.0)
            col_ref[:, t * E:(t + 1) * E] = band.astype(col_ref.dtype)

        # Conv1d (+ folded bias/BN) == ONE im2col matmul, contraction Kp.
        y = jnp.dot(col_ref[...], wc_ref[i],
                    preferred_element_type=jnp.float32) + sh_ref[i]

        # ReLU + Dropout(p=0.0 == identity) + residual add, all in f32.
        h = h + jnp.maximum(y, 0.0)

    o_ref[...] = h.astype(o_ref.dtype)


def mhc_conv_layers(x, params, *, num_layers, kernel_size,
                    param_dtype=jnp.float32, max_rows_per_tile=1024):
    """x: (B, L, in_dim) float32 -> (B, L, embed_dim) float32.

    param_dtype: keep float32 on v5e (no bf16 VPU/EUP); jnp.bfloat16 halves
    activation/weight DMA bytes on v6e/v7x (dots still accumulate in f32).
    """
    assert kernel_size % 2 == 1, (
        "odd kernel_size required for 'same'-length Conv1d + residual")
    assert num_layers >= 2, "need at least one ResidueConvBlock"
    B, L, in_dim = x.shape
    E = params["w0"].shape[1]
    nb = num_layers - 1
    pad = (kernel_size - 1) // 2
    kE = kernel_size * E
    k_padded = -(-kE // 128) * 128       # pad contraction dim to full lanes

    # ---- Host-side folding of eval-mode BatchNorm + conv bias -------------
    # first conv:  (x @ w0) * s0 + b0  ==  x @ (w0 * s0) + b0
    w0p = (params["w0"] * params["bn0_scale"]).astype(param_dtype)   # (Cin,E)
    b0 = params["bn0_shift"].astype(jnp.float32)                     # (1, E)
    # block conv:  (im2col @ wc + cb) * s + b == im2col @ (wc*s) + (cb*s + b)
    wcp = params["conv_w"] * params["bn_scale"][:, None]             # (nb,k,E,E)
    wcp = wcp.reshape(nb, kE, E)                                     # (nb,kE,E)
    if k_padded > kE:                    # zero rows; keeps im2col full-lane
        wcp = jnp.concatenate(
            [wcp, jnp.zeros((nb, k_padded - kE, E), wcp.dtype)], axis=1)
    wcp = wcp.astype(param_dtype)                                    # (nb,Kp,E)
    shp = (params["conv_b"] * params["bn_scale"]
           + params["bn_shift"]).astype(jnp.float32)                 # (nb,1,E)

    # Fold batch into the row (sublane) axis; free host-side reshape.
    x2 = x.reshape(B * L, in_dim).astype(param_dtype)
    # Per-row position inside its sequence (drives the conv-padding mask).
    pos = jnp.broadcast_to(
        (jnp.arange(B * L, dtype=jnp.int32) % L)[:, None], (B * L, E))

    # Row tiling over WHOLE sequences only (conv never crosses a tile):
    # a single grid step at toy sizes; parallel row tiles once B*L grows so
    # the working set stays inside VMEM (v7x: 64 MiB) and both v7x TCs help.
    spt = B                                          # sequences per tile
    if B * L > max_rows_per_tile:
        for d in range(1, B):
            if B % d == 0 and d * L <= max_rows_per_tile and (d * L) % 8 == 0:
                spt = d                              # largest valid divisor
    rows = spt * L
    num_tiles = B // spt

    kern = functools.partial(
        _mhc_conv_kernel, seq_len=L, ksize=kernel_size, pad=pad,
        num_blocks=nb, k_padded=k_padded)

    out = pl.pallas_call(
        kern,
        out_shape=jax.ShapeDtypeStruct((B * L, E), jnp.float32),
        grid=(num_tiles,),
        in_specs=[
            pl.BlockSpec((rows, in_dim), lambda i: (i, 0)),       # x rows
            pl.BlockSpec((rows, E), lambda i: (i, 0)),            # pos
            pl.BlockSpec((in_dim, E), lambda i: (0, 0)),          # w0 (folded)
            pl.BlockSpec((1, E), lambda i: (0, 0)),               # b0 shift
            pl.BlockSpec((nb, k_padded, E), lambda i: (0, 0, 0)),  # conv w
            pl.BlockSpec((nb, 1, E), lambda i: (0, 0, 0)),        # conv shift
        ],
        out_specs=pl.BlockSpec((rows, E), lambda i: (i, 0)),
        scratch_shapes=[pltpu.VMEM((rows, k_padded), param_dtype)],
        compiler_params=pltpu.CompilerParams(
            dimension_semantics=("parallel",)),
    )(x2, pos, w0p, b0, wcp, shp)

    return out.reshape(B, L, E)


def _fold_bn(kg, kb, km, kv, shape, eps=1e-5):
    """Deterministic synthetic eval-mode BatchNorm as per-channel scale/shift."""
    gamma = 1.0 + 0.1 * jax.random.normal(kg, shape, jnp.float32)
    beta = 0.1 * jax.random.normal(kb, shape, jnp.float32)
    mean = 0.1 * jax.random.normal(km, shape, jnp.float32)
    var = jnp.abs(jax.random.normal(kv, shape, jnp.float32)) + 0.5
    scale = gamma / jnp.sqrt(var + eps)
    shift = beta - mean * scale
    return scale, shift


def _ref_forward(x, params, *, num_layers, kernel_size):
    """Pure-JAX reference of the same forward pass (unfolded params)."""
    B, L, _ = x.shape
    pad = (kernel_size - 1) // 2
    h = jnp.einsum("blc,ce->ble", x, params["w0"])
    h = h * params["bn0_scale"][None] + params["bn0_shift"][None]
    for i in range(num_layers - 1):
        hp = jnp.pad(h, ((0, 0), (pad, pad), (0, 0)))
        y = jnp.broadcast_to(params["conv_b"][i][None], h.shape)
        for t in range(kernel_size):
            y = y + jnp.einsum("ble,ef->blf", hp[:, t:t + L],
                               params["conv_w"][i, t])
        y = y * params["bn_scale"][i][None] + params["bn_shift"][i][None]
        h = h + jnp.maximum(y, 0.0)
    return h


if __name__ == "__main__":
    # Module hyper-params (small, consistent with the PyTorch __init__).
    num_layers = 3          # -> 2 ResidueConvBlocks
    in_dim = 6
    embed_dim = 32
    mhc_len = 16
    kernel_size = 3
    batch = 2
    num_blocks = num_layers - 1

    key = jax.random.PRNGKey(0)
    ks = jax.random.split(key, 16)

    # Input: (B, mhc_len, in_dim), same as the PyTorch module's input.
    x = jax.random.normal(ks[0], (batch, mhc_len, in_dim), jnp.float32)

    # Deterministic synthetic parameters.
    w0 = 0.1 * jax.random.normal(ks[1], (in_dim, embed_dim), jnp.float32)
    bn0_scale, bn0_shift = _fold_bn(ks[2], ks[3], ks[4], ks[5], (1, embed_dim))
    conv_w = 0.05 * jax.random.normal(
        ks[6], (num_blocks, kernel_size, embed_dim, embed_dim), jnp.float32)
    conv_b = 0.1 * jax.random.normal(
        ks[7], (num_blocks, 1, embed_dim), jnp.float32)
    bn_scale, bn_shift = _fold_bn(
        ks[8], ks[9], ks[10], ks[11], (num_blocks, 1, embed_dim))

    params = dict(w0=w0, bn0_scale=bn0_scale, bn0_shift=bn0_shift,
                  conv_w=conv_w, conv_b=conv_b,
                  bn_scale=bn_scale, bn_shift=bn_shift)

    out = mhc_conv_layers(x, params, num_layers=num_layers,
                          kernel_size=kernel_size)
    out = jax.block_until_ready(out)

    ref = _ref_forward(x, params, num_layers=num_layers,
                       kernel_size=kernel_size)
    assert out.shape == (batch, mhc_len, embed_dim)
    assert jnp.allclose(out, ref, rtol=1e-4, atol=1e-4), "mismatch vs reference"

    print("KERNEL_OK")
</pallas_src>

<mosaic_0001>
module attributes {stable_mosaic.version = 11 : i64} {
  func.func @_mhc_conv_kernel(%arg0: i32, %arg1: memref<32x6xf32, #tpu.memory_space<vmem>>, %arg2: memref<32x32xi32, #tpu.memory_space<vmem>>, %arg3: memref<6x32xf32, #tpu.memory_space<vmem>>, %arg4: memref<1x32xf32, #tpu.memory_space<vmem>>, %arg5: memref<2x128x32xf32, #tpu.memory_space<vmem>>, %arg6: memref<2x1x32xf32, #tpu.memory_space<vmem>>, %arg7: memref<32x32xf32, #tpu.memory_space<vmem>>, %arg8: memref<32x128xf32, #tpu.memory_space<vmem>>) attributes {dimension_semantics = [#tpu.dimension_semantics<parallel>], iteration_bounds = array<i64: 1>, scalar_prefetch = 0 : i64, scratch_operands = 1 : i64, tpu.core_type = #tpu.core_type<tc>, window_params = [{transform_indices = @transform_0, window_bounds = array<i64: 32, 6>}, {transform_indices = @transform_1, window_bounds = array<i64: 32, 32>}, {pipeline_mode = #tpu.pipeline_mode<synchronous>, transform_indices = @transform_2, window_bounds = array<i64: 6, 32>}, {pipeline_mode = #tpu.pipeline_mode<synchronous>, transform_indices = @transform_3, window_bounds = array<i64: 1, 32>}, {pipeline_mode = #tpu.pipeline_mode<synchronous>, transform_indices = @transform_4, window_bounds = array<i64: 2, 128, 32>}, {pipeline_mode = #tpu.pipeline_mode<synchronous>, transform_indices = @transform_5, window_bounds = array<i64: 2, 1, 32>}, {transform_indices = @transform_6, window_bounds = array<i64: 32, 32>}]} {
    %c0 = arith.constant 0 : index
    %c0_0 = arith.constant 0 : index
    %0 = vector.load %arg1[%c0, %c0_0] : memref<32x6xf32, #tpu.memory_space<vmem>>, vector<32x6xf32>
    %c0_1 = arith.constant 0 : index
    %c0_2 = arith.constant 0 : index
    %1 = vector.load %arg3[%c0_1, %c0_2] : memref<6x32xf32, #tpu.memory_space<vmem>>, vector<6x32xf32>
    %cst = arith.constant dense<0.000000e+00> : vector<32x32xf32>
    %2 = tpu.matmul %0, %1, %cst {dimension_numbers = #tpu.dot_dimension_numbers<[1], [0], [0], [1], [0, 0, 1, 1], [], []>} : vector<32x6xf32>, vector<6x32xf32>, vector<32x32xf32> -> vector<32x32xf32>
    %c0_3 = arith.constant 0 : index
    %c0_4 = arith.constant 0 : index
    %3 = vector.load %arg4[%c0_3, %c0_4] : memref<1x32xf32, #tpu.memory_space<vmem>>, vector<1x32xf32>
    %4 = vector.broadcast %3 : vector<1x32xf32> to vector<32x32xf32>
    %5 = arith.addf %2, %4 : vector<32x32xf32>
    %c0_5 = arith.constant 0 : index
    %c0_6 = arith.constant 0 : index
    %6 = vector.load %arg2[%c0_5, %c0_6] : memref<32x32xi32, #tpu.memory_space<vmem>>, vector<32x32xi32>
    %cst_7 = arith.constant 0.000000e+00 : f32
    %7 = vector.broadcast %cst_7 : f32 to vector<32x32xf32>
    %c0_8 = arith.constant 0 : index
    %c96 = arith.constant 96 : index
    %8 = vector.load %arg8[%c0_8, %c96] : memref<32x128xf32, #tpu.memory_space<vmem>>, vector<32x32xf32>
    tpu.vector_store %arg8[%c0_8, %c96], %7 {strides = array<i32>} : memref<32x128xf32, #tpu.memory_space<vmem>>, vector<32x32xf32>,
    %c1_i32 = arith.constant 1 : i32
    %9 = tpu.dynamic_rotate %5 by %c1_i32 dim 0 : vector<32x32xf32>, i32 -> vector<32x32xf32>
    %c1_i32_9 = arith.constant 1 : i32
    %10 = vector.broadcast %c1_i32_9 : i32 to vector<32x32xi32>
    %11 = arith.cmpi sge, %6, %10 : vector<32x32xi32>
    %cst_10 = arith.constant 0.000000e+00 : f32
    %12 = vector.broadcast %cst_10 : f32 to vector<32x32xf32>
    %13 = arith.select %11, %9, %12 : vector<32x32xi1>, vector<32x32xf32>
    %c0_11 = arith.constant 0 : index
    %c0_12 = arith.constant 0 : index
    %14 = vector.load %arg8[%c0_11, %c0_12] : memref<32x128xf32, #tpu.memory_space<vmem>>, vector<32x32xf32>
    tpu.vector_store %arg8[%c0_11, %c0_12], %13 {strides = array<i32>} : memref<32x128xf32, #tpu.memory_space<vmem>>, vector<32x32xf32>,
    %c0_13 = arith.constant 0 : index
    %c32 = arith.constant 32 : index
    %15 = vector.load %arg8[%c0_13, %c32] : memref<32x128xf32, #tpu.memory_space<vmem>>, vector<32x32xf32>
    tpu.vector_store %arg8[%c0_13, %c32], %5 {strides = array<i32>} : memref<32x128xf32, #tpu.memory_space<vmem>>, vector<32x32xf32>,
    %c31_i32 = arith.constant 31 : i32
    %16 = tpu.dynamic_rotate %5 by %c31_i32 dim 0 : vector<32x32xf32>, i32 -> vector<32x32xf32>
    %c15_i32 = arith.constant 15 : i32
    %17 = vector.broadcast %c15_i32 : i32 to vector<32x32xi32>
    %18 = arith.cmpi slt, %6, %17 : vector<32x32xi32>
    %cst_14 = arith.constant 0.000000e+00 : f32
    %19 = vector.broadcast %cst_14 : f32 to vector<32x32xf32>
    %20 = arith.select %18, %16, %19 : vector<32x32xi1>, vector<32x32xf32>
    %c0_15 = arith.constant 0 : index
    %c64 = arith.constant 64 : index
    %21 = vector.load %arg8[%c0_15, %c64] : memref<32x128xf32, #tpu.memory_space<vmem>>, vector<32x32xf32>
    tpu.vector_store %arg8[%c0_15, %c64], %20 {strides = array<i32>} : memref<32x128xf32, #tpu.memory_space<vmem>>, vector<32x32xf32>,
    %c0_16 = arith.constant 0 : index
    %c0_17 = arith.constant 0 : index
    %22 = vector.load %arg8[%c0_16, %c0_17] : memref<32x128xf32, #tpu.memory_space<vmem>>, vector<32x128xf32>
    %c0_18 = arith.constant 0 : index
    %c0_19 = arith.constant 0 : index
    %c0_20 = arith.constant 0 : index
    %23 = vector.load %arg5[%c0_18, %c0_19, %c0_20] : memref<2x128x32xf32, #tpu.memory_space<vmem>>, vector<1x128x32xf32>
    %24 = vector.shape_cast %23 : vector<1x128x32xf32> to vector<128x32xf32>
    %cst_21 = arith.constant dense<0.000000e+00> : vector<32x32xf32>
    %25 = tpu.matmul %22, %24, %cst_21 {dimension_numbers = #tpu.dot_dimension_numbers<[1], [0], [0], [1], [0, 0, 1, 1], [], []>} : vector<32x128xf32>, vector<128x32xf32>, vector<32x32xf32> -> vector<32x32xf32>
    %c0_22 = arith.constant 0 : index
    %c0_23 = arith.constant 0 : index
    %c0_24 = arith.constant 0 : index
    %26 = vector.load %arg6[%c0_22, %c0_23, %c0_24] : memref<2x1x32xf32, #tpu.memory_space<vmem>>, vector<1x1x32xf32>
    %27 = vector.shape_cast %26 : vector<1x1x32xf32> to vector<1x32xf32>
    %28 = vector.broadcast %27 : vector<1x32xf32> to vector<32x32xf32>
    %29 = arith.addf %25, %28 : vector<32x32xf32>
    %cst_25 = arith.constant 0.000000e+00 : f32
    %30 = vector.broadcast %cst_25 : f32 to vector<32x32xf32>
    %31 = arith.maximumf %29, %30 : vector<32x32xf32>
    %32 = arith.addf %5, %31 : vector<32x32xf32>
    %c1_i32_26 = arith.constant 1 : i32
    %33 = tpu.dynamic_rotate %32 by %c1_i32_26 dim 0 : vector<32x32xf32>, i32 -> vector<32x32xf32>
    %c1_i32_27 = arith.constant 1 : i32
    %34 = vector.broadcast %c1_i32_27 : i32 to vector<32x32xi32>
    %35 = arith.cmpi sge, %6, %34 : vector<32x32xi32>
    %cst_28 = arith.constant 0.000000e+00 : f32
    %36 = vector.broadcast %cst_28 : f32 to vector<32x32xf32>
    %37 = arith.select %35, %33, %36 : vector<32x32xi1>, vector<32x32xf32>
    %c0_29 = arith.constant 0 : index
    %c0_30 = arith.constant 0 : index
    %38 = vector.load %arg8[%c0_29, %c0_30] : memref<32x128xf32, #tpu.memory_space<vmem>>, vector<32x32xf32>
    tpu.vector_store %arg8[%c0_29, %c0_30], %37 {strides = array<i32>} : memref<32x128xf32, #tpu.memory_space<vmem>>, vector<32x32xf32>,
    %c0_31 = arith.constant 0 : index
    %c32_32 = arith.constant 32 : index
    %39 = vector.load %arg8[%c0_31, %c32_32] : memref<32x128xf32, #tpu.memory_space<vmem>>, vector<32x32xf32>
    tpu.vector_store %arg8[%c0_31, %c32_32], %32 {strides = array<i32>} : memref<32x128xf32, #tpu.memory_space<vmem>>, vector<32x32xf32>,
    %c31_i32_33 = arith.constant 31 : i32
    %40 = tpu.dynamic_rotate %32 by %c31_i32_33 dim 0 : vector<32x32xf32>, i32 -> vector<32x32xf32>
    %c15_i32_34 = arith.constant 15 : i32
    %41 = vector.broadcast %c15_i32_34 : i32 to vector<32x32xi32>
    %42 = arith.cmpi slt, %6, %41 : vector<32x32xi32>
    %cst_35 = arith.constant 0.000000e+00 : f32
    %43 = vector.broadcast %cst_35 : f32 to vector<32x32xf32>
    %44 = arith.select %42, %40, %43 : vector<32x32xi1>, vector<32x32xf32>
    %c0_36 = arith.constant 0 : index
    %c64_37 = arith.constant 64 : index
    %45 = vector.load %arg8[%c0_36, %c64_37] : memref<32x128xf32, #tpu.memory_space<vmem>>, vector<32x32xf32>
    tpu.vector_store %arg8[%c0_36, %c64_37], %44 {strides = array<i32>} : memref<32x128xf32, #tpu.memory_space<vmem>>, vector<32x32xf32>,
    %c0_38 = arith.constant 0 : index
    %c0_39 = arith.constant 0 : index
    %46 = vector.load %arg8[%c0_38, %c0_39] : memref<32x128xf32, #tpu.memory_space<vmem>>, vector<32x128xf32>
    %c1 = arith.constant 1 : index
    %c0_40 = arith.constant 0 : index
    %c0_41 = arith.constant 0 : index
    %47 = vector.load %arg5[%c1, %c0_40, %c0_41] : memref<2x128x32xf32, #tpu.memory_space<vmem>>, vector<1x128x32xf32>
    %48 = vector.shape_cast %47 : vector<1x128x32xf32> to vector<128x32xf32>
    %cst_42 = arith.constant dense<0.000000e+00> : vector<32x32xf32>
    %49 = tpu.matmul %46, %48, %cst_42 {dimension_numbers = #tpu.dot_dimension_numbers<[1], [0], [0], [1], [0, 0, 1, 1], [], []>} : vector<32x128xf32>, vector<128x32xf32>, vector<32x32xf32> -> vector<32x32xf32>
    %c1_43 = arith.constant 1 : index
    %c0_44 = arith.constant 0 : index
    %c0_45 = arith.constant 0 : index
    %50 = vector.load %arg6[%c1_43, %c0_44, %c0_45] : memref<2x1x32xf32, #tpu.memory_space<vmem>>, vector<1x1x32xf32>
    %51 = vector.shape_cast %50 : vector<1x1x32xf32> to vector<1x32xf32>
    %52 = vector.broadcast %51 : vector<1x32xf32> to vector<32x32xf32>
    %53 = arith.addf %49, %52 : vector<32x32xf32>
    %cst_46 = arith.constant 0.000000e+00 : f32
    %54 = vector.broadcast %cst_46 : f32 to vector<32x32xf32>
    %55 = arith.maximumf %53, %54 : vector<32x32xf32>
    %56 = arith.addf %32, %55 : vector<32x32xf32>
    %c0_47 = arith.constant 0 : index
    %c0_48 = arith.constant 0 : index
    %57 = vector.load %arg7[%c0_47, %c0_48] : memref<32x32xf32, #tpu.memory_space<vmem>>, vector<32x32xf32>
    tpu.vector_store %arg7[%c0_47, %c0_48], %56 {strides = array<i32>} : memref<32x32xf32, #tpu.memory_space<vmem>>, vector<32x32xf32>,
    return
  }
  func.func @transform_0(%arg0: i32) -> (i32, i32) {
    %c0_i32 = arith.constant 0 : i32
    %c0_i32_0 = arith.constant 0 : i32
    return %arg0, %c0_i32 : i32, i32
  }
  func.func @transform_1(%arg0: i32) -> (i32, i32) {
    %c0_i32 = arith.constant 0 : i32
    %c0_i32_0 = arith.constant 0 : i32
    return %arg0, %c0_i32 : i32, i32
  }
  func.func @transform_2(%arg0: i32) -> (i32, i32) {
    %c0_i32 = arith.constant 0 : i32
    %c0_i32_0 = arith.constant 0 : i32
    %c0_i32_1 = arith.constant 0 : i32
    return %c0_i32, %c0_i32_0 : i32, i32
  }
  func.func @transform_3(%arg0: i32) -> (i32, i32) {
    %c0_i32 = arith.constant 0 : i32
    %c0_i32_0 = arith.constant 0 : i32
    %c0_i32_1 = arith.constant 0 : i32
    return %c0_i32, %c0_i32_0 : i32, i32
  }
  func.func @transform_4(%arg0: i32) -> (i32, i32, i32) {
    %c0_i32 = arith.constant 0 : i32
    %c0_i32_0 = arith.constant 0 : i32
    %c0_i32_1 = arith.constant 0 : i32
    %c0_i32_2 = arith.constant 0 : i32
    return %c0_i32, %c0_i32_0, %c0_i32_1 : i32, i32, i32
  }
  func.func @transform_5(%arg0: i32) -> (i32, i32, i32) {
    %c0_i32 = arith.constant 0 : i32
    %c0_i32_0 = arith.constant 0 : i32
    %c0_i32_1 = arith.constant 0 : i32
    %c0_i32_2 = arith.constant 0 : i32
    return %c0_i32, %c0_i32_0, %c0_i32_1 : i32, i32, i32
  }
  func.func @transform_6(%arg0: i32) -> (i32, i32) {
    %c0_i32 = arith.constant 0 : i32
    %c0_i32_0 = arith.constant 0 : i32
    return %arg0, %c0_i32 : i32, i32
  }
}

</mosaic_0001>

<llo_original>
// kernel: tpu_custom_call.1
$region0: #{tpu_custom_call.1}
  #allocation0 [shape = 'u32[]', space=smem, size = 0x4, offset = 0x4, fixed_abs, tag = 'smem constant byte address 0x4 - core index']
  #allocation1 [shape = 'u32[144,128]{1,0:T(1,128)}', space=vmem, size = 0x12000, scoped, tag = 'internal scratch']
  #allocation2 [shape = 'f32[32,128]{1,0:T(8,128)}', space=vmem, size = 0x4000, scoped, tag = 'scratch operand']
  %s0 = inlined_call_operand.vmem [shape: f32[32,6], index: 0, kind: input, shape index: {}]
  %s1 = inlined_call_operand.vmem [shape: s32[32,32], index: 1, kind: input, shape index: {}]
  %s2 = inlined_call_operand.vmem [shape: f32[6,32], index: 2, kind: input, shape index: {}]
  %s3 = inlined_call_operand.vmem [shape: f32[1,32], index: 3, kind: input, shape index: {}]
  %s4 = inlined_call_operand.vmem [shape: f32[2,128,32], index: 4, kind: input, shape index: {}]
  %s5 = inlined_call_operand.vmem [shape: f32[2,1,32], index: 5, kind: input, shape index: {}]
  %s6 = inlined_call_operand.hbm [shape: f32[32,32], index: 6, kind: output, shape index: {}]
  %s7 = sld [smem:[#allocation0]]
  $region34: #{tpu_custom_call.1} parent=0
    _
  %s9 = ssub.s32 1, %s7
  %s10 = scalar_select 0, %s9, %s7
  $region1: #{tpu_custom_call.1} parent=0
    #allocation3 [shape = 'u8[16384]{0}', space=vmem, size = 0x4000, scoped, tag = 'output window, operand 0, single buffered']
    #allocation4 [shape = 's32[1]{0}', space=sflag, size = 0x4, scoped, tag = 'scoped memory for tpu_custom_call.1']
    %11 = vsyncpa [#allocation4], 0
    // Predicated region
    $region2: #{tpu_custom_call.1} parent=1 // pred_check
      _
    $region3: #{tpu_custom_call.1} parent=1 // pred_check_branch
      %13 = sbr.rel (0) target = $region5
    $region4: #{tpu_custom_call.1} parent=1 // pred_region
      _
    $region5: #{tpu_custom_call.1} parent=1 // pred_fallthru
      _
    // Predicated region
    $region6: #{tpu_custom_call.1} parent=1 // pred_check
      _
    $region7: #{tpu_custom_call.1} parent=1 // pred_check_branch
      %15 = sbr.rel (0) target = $region9
    $region8: #{tpu_custom_call.1} parent=1 // pred_region
      _
    $region9: #{tpu_custom_call.1} parent=1 // pred_fallthru
      _
    // Predicated region
    $region10: #{tpu_custom_call.1} parent=1 // pred_check
      _
    $region11: #{tpu_custom_call.1} parent=1 // pred_check_branch
      %17 = sbr.rel (0) target = $region13
    $region12: #{tpu_custom_call.1} parent=1 // pred_region
      _
    $region13: #{tpu_custom_call.1} parent=1 // pred_fallthru
      _
    // Predicated region
    $region14: #{tpu_custom_call.1} parent=1 // pred_check
      _
    $region15: #{tpu_custom_call.1} parent=1 // pred_check_branch
      %19 = sbr.rel (0) target = $region17
    $region16: #{tpu_custom_call.1} parent=1 // pred_region
      _
    $region17: #{tpu_custom_call.1} parent=1 // pred_fallthru
      _
    // Predicated region
    $region18: #{tpu_custom_call.1} parent=1 // pred_check
      _
    $region19: #{tpu_custom_call.1} parent=1 // pred_check_branch
      %21 = sbr.rel (0) target = $region21
    $region20: #{tpu_custom_call.1} parent=1 // pred_region
      _
    $region21: #{tpu_custom_call.1} parent=1 // pred_fallthru
      _
    // Predicated region
    $region22: #{tpu_custom_call.1} parent=1 // pred_check
      _
    $region23: #{tpu_custom_call.1} parent=1 // pred_check_branch
      %23 = sbr.rel (0) target = $region25
    $region24: #{tpu_custom_call.1} parent=1 // pred_region
      _
    $region25: #{tpu_custom_call.1} parent=1 // pred_fallthru
      _
    %v24 = vld [vmem:[%s0] sm:$0xff]
    %v25 = vld [vmem:[%s0 + $0x8] sm:$0xff]
    %v26 = vld [vmem:[%s0 + $0x10] sm:$0xff]
    %v27 = vld [vmem:[%s0 + $0x18] sm:$0xff]
    %v28 = vld [vmem:[%s2] sm:$0x3f]
    %v29 = vld [vmem:[%s3] sm:$0x1]
    %v31 = vlaneseq
    %v32 = vshrl.u32 %v31, 7
    %v33 = vsub.s32 0, %v32
    %v34 = vrot.slane %v29, %v33
    %vm36 = vcmask 48128
    %v38 = vsel %vm36, %v24, 0
    %v41 = vsel %vm36, %v25, 0
    %v44 = vsel %vm36, %v26, 0
    %v47 = vsel %vm36, %v27, 0
    %vm49 = vcmask 1045504
    %v51 = vsel %vm49, %v28, 0
    %53 = vmatprep.subr.mxu0 0.0
    %54 = vmatpush1.msra.mxu0 %v51
    %55 = vmatprep.subr.mxu0 0.0
    %56 = vmatpush1.msra.mxu0 0.0
    %57 = vmatprep.subr.mxu0 0.0
    %58 = vmatpush1.msra.mxu0 0.0
    %59 = vmatprep.subr.mxu0 0.0
    %60 = vmatpush1.msra.mxu0 0.0
    %61 = vmatprep.subr.mxu0 0.0
    %62 = vmatpush1.msra.mxu0 0.0
    %63 = vmatprep.subr.mxu0 0.0
    %64 = vmatpush1.msra.mxu0 0.0
    %65 = vmatprep.subr.mxu0 0.0
    %66 = vmatpush1.msra.mxu0 0.0
    %67 = vmatprep.subr.mxu0 0.0
    %68 = vmatpush1.msra.mxu0 0.0
    %69 = vmatprep.subr.mxu0 0.0
    %70 = vmatpush1.msra.mxu0 0.0
    %71 = vmatprep.subr.mxu0 0.0
    %72 = vmatpush1.msra.mxu0 0.0
    %73 = vmatprep.subr.mxu0 0.0
    %74 = vmatpush1.msra.mxu0 0.0
    %75 = vmatprep.subr.mxu0 0.0
    %76 = vmatpush1.msra.mxu0 0.0
    %77 = vmatprep.subr.mxu0 0.0
    %78 = vmatpush1.msra.mxu0 0.0
    %79 = vmatprep.subr.mxu0 0.0
    %80 = vmatpush1.msra.mxu0 0.0
    %81 = vmatprep.subr.mxu0 0.0
    %82 = vmatpush1.msra.mxu0 0.0
    %83 = vmatprep.subr.mxu0 0.0
    %84 = vmatpush1.msra.mxu0 0.0
    %85 = vmatprep.subr.mxu0 0.0
    %86 = vmatpush1.msra.mxu0 0.0
    %87 = vmatprep.subr.mxu0 0.0
    %88 = vmatpush1.msra.mxu0 0.0
    %89 = vmatprep.subr.mxu0 0.0
    %90 = vmatpush1.msra.mxu0 0.0
    %91 = vmatprep.subr.mxu0 0.0
    %92 = vmatpush1.msra.mxu0 0.0
    %93 = vmatprep.subr.mxu0 0.0
    %94 = vmatpush1.msra.mxu0 0.0
    %95 = vmatprep.subr.mxu0 0.0
    %96 = vmatpush1.msra.mxu0 0.0
    %97 = vmatprep.subr.mxu0 0.0
    %98 = vmatpush1.msra.mxu0 0.0
    %99 = vmatprep.subr.mxu0 0.0
    %100 = vmatpush1.msra.mxu0 0.0
    %101 = vmatprep.subr.mxu0 0.0
    %102 = vmatpush1.msra.mxu0 0.0
    %103 = vmatprep.subr.mxu0 0.0
    %104 = vmatpush1.msra.mxu0 0.0
    %105 = vmatprep.subr.mxu0 0.0
    %106 = vmatpush1.msra.mxu0 0.0
    %107 = vmatprep.subr.mxu0 0.0
    %108 = vmatpush1.msra.mxu0 0.0
    %109 = vmatprep.subr.mxu0 0.0
    %110 = vmatpush1.msra.mxu0 0.0
    %111 = vmatprep.subr.mxu0 0.0
    %112 = vmatpush1.msra.mxu0 0.0
    %113 = vmatprep.subr.mxu0 0.0
    %114 = vmatpush1.msra.mxu0 0.0
    %115 = vmatprep.subr.mxu0 0.0
    %116 = vmatpush1.msra.mxu0 0.0
    %117 = vmatprep.mubr.f32.mxu0 0.0
    %118 = vmatmul.mubr.f32.gmra.mrb[0].mxu0 %v38
    %v119 = vpop.f32.mrb[0].mxu0
    %v120 = vadd.f32 %v34, %v119
    %v121 = vpop.f32.mrb[0].mxu0
    %122 = vmatprep.mubr.f32.mxu0 0.0
    %123 = vmatmul.mubr.f32.gmra.mrb[0].mxu0 %v41
    %v124 = vpop.f32.mrb[0].mxu0
    %v125 = vadd.f32 %v34, %v124
    %v126 = vpop.f32.mrb[0].mxu0
    %127 = vmatprep.mubr.f32.mxu0 0.0
    %128 = vmatmul.mubr.f32.gmra.mrb[0].mxu0 %v44
    %v129 = vpop.f32.mrb[0].mxu0
    %v130 = vadd.f32 %v34, %v129
    %v131 = vpop.f32.mrb[0].mxu0
    %132 = vmatprep.mubr.f32.mxu0 0.0
    %133 = vmatmul.mubr.f32.gmra.mrb[0].mxu0 %v47
    %v134 = vpop.f32.mrb[0].mxu0
    %v135 = vadd.f32 %v34, %v134
    %v136 = vpop.f32.mrb[0].mxu0
    %137 = vdwg.mxu0
    %v138 = vld [vmem:[%s1] sm:$0xff]
    %v139 = vld [vmem:[%s1 + $0x8] sm:$0xff]
    %v140 = vld [vmem:[%s1 + $0x10] sm:$0xff]
    %v141 = vld [vmem:[%s1 + $0x18] sm:$0xff]
    %vm142 = vcmask 1048320
    %143 = vst.msk [vmem:[#allocation2] sm:$0xff] %vm142, 0.0
    %144 = vst.msk [vmem:[#allocation2 + $0x8] sm:$0xff] %vm142, 0.0
    %145 = vst.msk [vmem:[#allocation2 + $0x10] sm:$0xff] %vm142, 0.0
    %146 = vst.msk [vmem:[#allocation2 + $0x18] sm:$0xff] %vm142, 0.0
    %v147 = vrot.slane %v120, 7
    %v148 = vrot.slane %v125, 7
    %v149 = vrot.slane %v130, 7
    %v150 = vrot.slane %v135, 7
    %v151 = vlaneseq
    %v152 = vshrl.u32 %v151, 7
    %vm153 = vcmp.lt.s32.totalorder %v152, 1
    %v154 = vsel %vm153, %v149, %v150
    %v155 = vsel %vm153, %v148, %v149
    %v156 = vsel %vm153, %v147, %v148
    %v157 = vsel %vm153, %v150, %v147
    %vm158 = vcmp.ge.s32.totalorder %v138, 1
    %vm159 = vcmp.ge.s32.totalorder %v139, 1
    %vm160 = vcmp.ge.s32.totalorder %v140, 1
    %vm161 = vcmp.ge.s32.totalorder %v141, 1
    %v162 = vsel %vm158, %v157, 0.0
    %v163 = vsel %vm159, %v156, 0.0
    %v164 = vsel %vm160, %v155, 0.0
    %v165 = vsel %vm161, %v154, 0.0
    %vm166 = vcmask 261120
    %167 = vst.msk [vmem:[#allocation2] sm:$0xff] %vm166, %v162
    %168 = vst.msk [vmem:[#allocation2 + $0x8] sm:$0xff] %vm166, %v163
    %169 = vst.msk [vmem:[#allocation2 + $0x10] sm:$0xff] %vm166, %v164
    %170 = vst.msk [vmem:[#allocation2 + $0x18] sm:$0xff] %vm166, %v165
    %175 = vrot.lane.b32.xlu0 %v120, 32
    %v176 = vpop.permute.xlu0 %175
    %177 = vrot.lane.b32.xlu0 %v125, 32
    %v178 = vpop.permute.xlu0 %177
    %179 = vrot.lane.b32.xlu0 %v130, 32
    %v180 = vpop.permute.xlu0 %179
    %181 = vrot.lane.b32.xlu0 %v135, 32
    %v182 = vpop.permute.xlu0 %181
    %vm187 = vcmask 523520
    %188 = vst.msk [vmem:[#allocation2] sm:$0xff] %vm187, %v176
    %189 = vst.msk [vmem:[#allocation2 + $0x8] sm:$0xff] %vm187, %v178
    %190 = vst.msk [vmem:[#allocation2 + $0x10] sm:$0xff] %vm187, %v180
    %191 = vst.msk [vmem:[#allocation2 + $0x18] sm:$0xff] %vm187, %v182
    %v192 = vrot.slane %v120, 1
    %v193 = vrot.slane %v125, 1
    %v194 = vrot.slane %v130, 1
    %v195 = vrot.slane %v135, 1
    %vm196 = vcmp.lt.s32.totalorder %v152, 7
    %v197 = vsel %vm196, %v194, %v195
    %v198 = vsel %vm196, %v193, %v194
    %v199 = vsel %vm196, %v192, %v193
    %v200 = vsel %vm196, %v195, %v192
    %vm201 = vcmp.lt.s32.totalorder %v138, 15
    %vm202 = vcmp.lt.s32.totalorder %v139, 15
    %vm203 = vcmp.lt.s32.totalorder %v140, 15
    %vm204 = vcmp.lt.s32.totalorder %v141, 15
    %v205 = vsel %vm201, %v199, 0.0
    %v206 = vsel %vm202, %v198, 0.0
    %v207 = vsel %vm203, %v197, 0.0
    %v208 = vsel %vm204, %v200, 0.0
    %213 = vrot.lane.b32.xlu0 %v205, 64
    %v214 = vpop.permute.xlu0 %213
    %215 = vrot.lane.b32.xlu0 %v206, 64
    %v216 = vpop.permute.xlu0 %215
    %217 = vrot.lane.b32.xlu0 %v207, 64
    %v218 = vpop.permute.xlu0 %217
    %219 = vrot.lane.b32.xlu0 %v208, 64
    %v220 = vpop.permute.xlu0 %219
    %vm225 = vcmask 785920
    %226 = vst.msk [vmem:[#allocation2] sm:$0xff] %vm225, %v214
    %227 = vst.msk [vmem:[#allocation2 + $0x8] sm:$0xff] %vm225, %v216
    %228 = vst.msk [vmem:[#allocation2 + $0x10] sm:$0xff] %vm225, %v218
    %229 = vst.msk [vmem:[#allocation2 + $0x18] sm:$0xff] %vm225, %v220
    %v230 = vld [vmem:[#allocation2] sm:$0xff]
    %v231 = vld [vmem:[#allocation2 + $0x8] sm:$0xff]
    %v232 = vld [vmem:[#allocation2 + $0x10] sm:$0xff]
    %v233 = vld [vmem:[#allocation2 + $0x18] sm:$0xff]
    %v234 = vld [vmem:[%s4] sm:$0xff]
    %v235 = vld [vmem:[%s4 + $0x8] sm:$0xff]
    %v236 = vld [vmem:[%s4 + $0x10] sm:$0xff]
    %v237 = vld [vmem:[%s4 + $0x18] sm:$0xff]
    %v238 = vld [vmem:[%s4 + $0x20] sm:$0xff]
    %v239 = vld [vmem:[%s4 + $0x28] sm:$0xff]
    %v240 = vld [vmem:[%s4 + $0x30] sm:$0xff]
    %v241 = vld [vmem:[%s4 + $0x38] sm:$0xff]
    %v242 = vld [vmem:[%s4 + $0x40] sm:$0xff]
    %v243 = vld [vmem:[%s4 + $0x48] sm:$0xff]
    %v244 = vld [vmem:[%s4 + $0x50] sm:$0xff]
    %v245 = vld [vmem:[%s4 + $0x58] sm:$0xff]
    %v246 = vld [vmem:[%s4 + $0x60] sm:$0xff]
    %v247 = vld [vmem:[%s4 + $0x68] sm:$0xff]
    %v248 = vld [vmem:[%s4 + $0x70] sm:$0xff]
    %v249 = vld [vmem:[%s4 + $0x78] sm:$0xff]
    %v250 = vld [vmem:[%s5] sm:$0x1]
    %v252 = vlaneseq
    %v253 = vshrl.u32 %v252, 7
    %v254 = vsub.s32 0, %v253
    %v255 = vrot.slane %v250, %v254
    %257 = vmatprep.subr.mxu0 0.0
    %258 = vmatpush1.msra.mxu0 %v234
    %259 = vmatprep.subr.mxu0 0.0
    %260 = vmatpush1.msra.mxu0 %v235
    %261 = vmatprep.subr.mxu0 0.0
    %262 = vmatpush1.msra.mxu0 %v236
    %263 = vmatprep.subr.mxu0 0.0
    %264 = vmatpush1.msra.mxu0 %v237
    %265 = vmatprep.subr.mxu0 0.0
    %266 = vmatpush1.msra.mxu0 %v238
    %267 = vmatprep.subr.mxu0 0.0
    %268 = vmatpush1.msra.mxu0 %v239
    %269 = vmatprep.subr.mxu0 0.0
    %270 = vmatpush1.msra.mxu0 %v240
    %271 = vmatprep.subr.mxu0 0.0
    %272 = vmatpush1.msra.mxu0 %v241
    %273 = vmatprep.subr.mxu0 0.0
    %274 = vmatpush1.msra.mxu0 %v242
    %275 = vmatprep.subr.mxu0 0.0
    %276 = vmatpush1.msra.mxu0 %v243
    %277 = vmatprep.subr.mxu0 0.0
    %278 = vmatpush1.msra.mxu0 %v244
    %279 = vmatprep.subr.mxu0 0.0
    %280 = vmatpush1.msra.mxu0 %v245
    %281 = vmatprep.subr.mxu0 0.0
    %282 = vmatpush1.msra.mxu0 %v246
    %283 = vmatprep.subr.mxu0 0.0
    %284 = vmatpush1.msra.mxu0 %v247
    %285 = vmatprep.subr.mxu0 0.0
    %286 = vmatpush1.msra.mxu0 %v248
    %287 = vmatprep.subr.mxu0 0.0
    %288 = vmatpush1.msra.mxu0 %v249
    %289 = vmatprep.subr.mxu0 0.0
    %290 = vmatpush1.msra.mxu0 0.0
    %291 = vmatprep.subr.mxu0 0.0
    %292 = vmatpush1.msra.mxu0 0.0
    %293 = vmatprep.subr.mxu0 0.0
    %294 = vmatpush1.msra.mxu0 0.0
    %295 = vmatprep.subr.mxu0 0.0
    %296 = vmatpush1.msra.mxu0 0.0
    %297 = vmatprep.subr.mxu0 0.0
    %298 = vmatpush1.msra.mxu0 0.0
    %299 = vmatprep.subr.mxu0 0.0
    %300 = vmatpush1.msra.mxu0 0.0
    %301 = vmatprep.subr.mxu0 0.0
    %302 = vmatpush1.msra.mxu0 0.0
    %303 = vmatprep.subr.mxu0 0.0
    %304 = vmatpush1.msra.mxu0 0.0
    %305 = vmatprep.subr.mxu0 0.0
    %306 = vmatpush1.msra.mxu0 0.0
    %307 = vmatprep.subr.mxu0 0.0
    %308 = vmatpush1.msra.mxu0 0.0
    %309 = vmatprep.subr.mxu0 0.0
    %310 = vmatpush1.msra.mxu0 0.0
    %311 = vmatprep.subr.mxu0 0.0
    %312 = vmatpush1.msra.mxu0 0.0
    %313 = vmatprep.subr.mxu0 0.0
    %314 = vmatpush1.msra.mxu0 0.0
    %315 = vmatprep.subr.mxu0 0.0
    %316 = vmatpush1.msra.mxu0 0.0
    %317 = vmatprep.subr.mxu0 0.0
    %318 = vmatpush1.msra.mxu0 0.0
    %319 = vmatprep.subr.mxu0 0.0
    %320 = vmatpush1.msra.mxu0 0.0
    %321 = vmatprep.mubr.f32.mxu0 0.0
    %322 = vmatmul.mubr.f32.gmra.mrb[0].mxu0 %v230
    %v323 = vpop.f32.mrb[0].mxu0
    %v324 = vadd.f32 %v255, %v323
    %v325 = vpop.f32.mrb[0].mxu0
    %326 = vmatprep.mubr.f32.mxu0 0.0
    %327 = vmatmul.mubr.f32.gmra.mrb[0].mxu0 %v231
    %v328 = vpop.f32.mrb[0].mxu0
    %v329 = vadd.f32 %v255, %v328
    %v330 = vpop.f32.mrb[0].mxu0
    %331 = vmatprep.mubr.f32.mxu0 0.0
    %332 = vmatmul.mubr.f32.gmra.mrb[0].mxu0 %v232
    %v333 = vpop.f32.mrb[0].mxu0
    %v334 = vadd.f32 %v255, %v333
    %v335 = vpop.f32.mrb[0].mxu0
    %336 = vmatprep.mubr.f32.mxu0 0.0
    %337 = vmatmul.mubr.f32.gmra.mrb[0].mxu0 %v233
    %v338 = vpop.f32.mrb[0].mxu0
    %v339 = vadd.f32 %v255, %v338
    %v340 = vpop.f32.mrb[0].mxu0
    %341 = vdwg.mxu0
    %v342 = vmax.f32 %v324, 0.0
    %v343 = vmax.f32 %v329, 0.0
    %v344 = vmax.f32 %v334, 0.0
    %v345 = vmax.f32 %v339, 0.0
    %v346 = vadd.f32 %v120, %v342
    %v347 = vadd.f32 %v125, %v343
    %v348 = vadd.f32 %v130, %v344
    %v349 = vadd.f32 %v135, %v345
    %v350 = vrot.slane %v346, 7
    %v351 = vrot.slane %v347, 7
    %v352 = vrot.slane %v348, 7
    %v353 = vrot.slane %v349, 7
    %v354 = vsel %vm153, %v352, %v353
    %v355 = vsel %vm153, %v351, %v352
    %v356 = vsel %vm153, %v350, %v351
    %v357 = vsel %vm153, %v353, %v350
    %v358 = vsel %vm158, %v357, 0.0
    %v359 = vsel %vm159, %v356, 0.0
    %v360 = vsel %vm160, %v355, 0.0
    %v361 = vsel %vm161, %v354, 0.0
    %362 = vst.msk [vmem:[#allocation2] sm:$0xff] %vm166, %v358
    %363 = vst.msk [vmem:[#allocation2 + $0x8] sm:$0xff] %vm166, %v359
    %364 = vst.msk [vmem:[#allocation2 + $0x10] sm:$0xff] %vm166, %v360
    %365 = vst.msk [vmem:[#allocation2 + $0x18] sm:$0xff] %vm166, %v361
    %370 = vrot.lane.b32.xlu0 %v346, 32
    %v371 = vpop.permute.xlu0 %370
    %372 = vrot.lane.b32.xlu0 %v347, 32
    %v373 = vpop.permute.xlu0 %372
    %374 = vrot.lane.b32.xlu0 %v348, 32
    %v375 = vpop.permute.xlu0 %374
    %376 = vrot.lane.b32.xlu0 %v349, 32
    %v377 = vpop.permute.xlu0 %376
    %382 = vst.msk [vmem:[#allocation2] sm:$0xff] %vm187, %v371
    %383 = vst.msk [vmem:[#allocation2 + $0x8] sm:$0xff] %vm187, %v373
    %384 = vst.msk [vmem:[#allocation2 + $0x10] sm:$0xff] %vm187, %v375
    %385 = vst.msk [vmem:[#allocation2 + $0x18] sm:$0xff] %vm187, %v377
    %v386 = vrot.slane %v346, 1
    %v387 = vrot.slane %v347, 1
    %v388 = vrot.slane %v348, 1
    %v389 = vrot.slane %v349, 1
    %v390 = vsel %vm196, %v388, %v389
    %v391 = vsel %vm196, %v387, %v388
    %v392 = vsel %vm196, %v386, %v387
    %v393 = vsel %vm196, %v389, %v386
    %v394 = vsel %vm201, %v392, 0.0
    %v395 = vsel %vm202, %v391, 0.0
    %v396 = vsel %vm203, %v390, 0.0
    %v397 = vsel %vm204, %v393, 0.0
    %402 = vrot.lane.b32.xlu0 %v394, 64
    %v403 = vpop.permute.xlu0 %402
    %404 = vrot.lane.b32.xlu0 %v395, 64
    %v405 = vpop.permute.xlu0 %404
    %406 = vrot.lane.b32.xlu0 %v396, 64
    %v407 = vpop.permute.xlu0 %406
    %408 = vrot.lane.b32.xlu0 %v397, 64
    %v409 = vpop.permute.xlu0 %408
    %414 = vst.msk [vmem:[#allocation2] sm:$0xff] %vm225, %v403
    %415 = vst.msk [vmem:[#allocation2 + $0x8] sm:$0xff] %vm225, %v405
    %416 = vst.msk [vmem:[#allocation2 + $0x10] sm:$0xff] %vm225, %v407
    %417 = vst.msk [vmem:[#allocation2 + $0x18] sm:$0xff] %vm225, %v409
    %v418 = vld [vmem:[#allocation2] sm:$0xff]
    %v419 = vld [vmem:[#allocation2 + $0x8] sm:$0xff]
    %v420 = vld [vmem:[#allocation2 + $0x10] sm:$0xff]
    %v421 = vld [vmem:[#allocation2 + $0x18] sm:$0xff]
    %s422 = scalar_lea.vmem %s4, 128
    %v423 = vld [vmem:[%s422] sm:$0xff]
    %v424 = vld [vmem:[%s422 + $0x8] sm:$0xff]
    %v425 = vld [vmem:[%s422 + $0x10] sm:$0xff]
    %v426 = vld [vmem:[%s422 + $0x18] sm:$0xff]
    %v427 = vld [vmem:[%s422 + $0x20] sm:$0xff]
    %v428 = vld [vmem:[%s422 + $0x28] sm:$0xff]
    %v429 = vld [vmem:[%s422 + $0x30] sm:$0xff]
    %v430 = vld [vmem:[%s422 + $0x38] sm:$0xff]
    %v431 = vld [vmem:[%s422 + $0x40] sm:$0xff]
    %v432 = vld [vmem:[%s422 + $0x48] sm:$0xff]
    %v433 = vld [vmem:[%s422 + $0x50] sm:$0xff]
    %v434 = vld [vmem:[%s422 + $0x58] sm:$0xff]
    %v435 = vld [vmem:[%s422 + $0x60] sm:$0xff]
    %v436 = vld [vmem:[%s422 + $0x68] sm:$0xff]
    %v437 = vld [vmem:[%s422 + $0x70] sm:$0xff]
    %v438 = vld [vmem:[%s422 + $0x78] sm:$0xff]
    %s439 = scalar_lea.vmem %s5, 1
    %v440 = vld [vmem:[%s439] sm:$0x1]
    %v442 = vlaneseq
    %v443 = vshrl.u32 %v442, 7
    %v444 = vsub.s32 0, %v443
    %v445 = vrot.slane %v440, %v444
    %447 = vmatprep.subr.mxu0 0.0
    %448 = vmatpush1.msra.mxu0 %v423
    %449 = vmatprep.subr.mxu0 0.0
    %450 = vmatpush1.msra.mxu0 %v424
    %451 = vmatprep.subr.mxu0 0.0
    %452 = vmatpush1.msra.mxu0 %v425
    %453 = vmatprep.subr.mxu0 0.0
    %454 = vmatpush1.msra.mxu0 %v426
    %455 = vmatprep.subr.mxu0 0.0
    %456 = vmatpush1.msra.mxu0 %v427
    %457 = vmatprep.subr.mxu0 0.0
    %458 = vmatpush1.msra.mxu0 %v428
    %459 = vmatprep.subr.mxu0 0.0
    %460 = vmatpush1.msra.mxu0 %v429
    %461 = vmatprep.subr.mxu0 0.0
    %462 = vmatpush1.msra.mxu0 %v430
    %463 = vmatprep.subr.mxu0 0.0
    %464 = vmatpush1.msra.mxu0 %v431
    %465 = vmatprep.subr.mxu0 0.0
    %466 = vmatpush1.msra.mxu0 %v432
    %467 = vmatprep.subr.mxu0 0.0
    %468 = vmatpush1.msra.mxu0 %v433
    %469 = vmatprep.subr.mxu0 0.0
    %470 = vmatpush1.msra.mxu0 %v434
    %471 = vmatprep.subr.mxu0 0.0
    %472 = vmatpush1.msra.mxu0 %v435
    %473 = vmatprep.subr.mxu0 0.0
    %474 = vmatpush1.msra.mxu0 %v436
    %475 = vmatprep.subr.mxu0 0.0
    %476 = vmatpush1.msra.mxu0 %v437
    %477 = vmatprep.subr.mxu0 0.0
    %478 = vmatpush1.msra.mxu0 %v438
    %479 = vmatprep.subr.mxu0 0.0
    %480 = vmatpush1.msra.mxu0 0.0
    %481 = vmatprep.subr.mxu0 0.0
    %482 = vmatpush1.msra.mxu0 0.0
    %483 = vmatprep.subr.mxu0 0.0
    %484 = vmatpush1.msra.mxu0 0.0
    %485 = vmatprep.subr.mxu0 0.0
    %486 = vmatpush1.msra.mxu0 0.0
    %487 = vmatprep.subr.mxu0 0.0
    %488 = vmatpush1.msra.mxu0 0.0
    %489 = vmatprep.subr.mxu0 0.0
    %490 = vmatpush1.msra.mxu0 0.0
    %491 = vmatprep.subr.mxu0 0.0
    %492 = vmatpush1.msra.mxu0 0.0
    %493 = vmatprep.subr.mxu0 0.0
    %494 = vmatpush1.msra.mxu0 0.0
    %495 = vmatprep.subr.mxu0 0.0
    %496 = vmatpush1.msra.mxu0 0.0
    %497 = vmatprep.subr.mxu0 0.0
    %498 = vmatpush1.msra.mxu0 0.0
    %499 = vmatprep.subr.mxu0 0.0
    %500 = vmatpush1.msra.mxu0 0.0
    %501 = vmatprep.subr.mxu0 0.0
    %502 = vmatpush1.msra.mxu0 0.0
    %503 = vmatprep.subr.mxu0 0.0
    %504 = vmatpush1.msra.mxu0 0.0
    %505 = vmatprep.subr.mxu0 0.0
    %506 = vmatpush1.msra.mxu0 0.0
    %507 = vmatprep.subr.mxu0 0.0
    %508 = vmatpush1.msra.mxu0 0.0
    %509 = vmatprep.subr.mxu0 0.0
    %510 = vmatpush1.msra.mxu0 0.0
    %511 = vmatprep.mubr.f32.mxu0 0.0
    %512 = vmatmul.mubr.f32.gmra.mrb[0].mxu0 %v418
    %v513 = vpop.f32.mrb[0].mxu0
    %v514 = vadd.f32 %v445, %v513
    %v515 = vpop.f32.mrb[0].mxu0
    %516 = vmatprep.mubr.f32.mxu0 0.0
    %517 = vmatmul.mubr.f32.gmra.mrb[0].mxu0 %v419
    %v518 = vpop.f32.mrb[0].mxu0
    %v519 = vadd.f32 %v445, %v518
    %v520 = vpop.f32.mrb[0].mxu0
    %521 = vmatprep.mubr.f32.mxu0 0.0
    %522 = vmatmul.mubr.f32.gmra.mrb[0].mxu0 %v420
    %v523 = vpop.f32.mrb[0].mxu0
    %v524 = vadd.f32 %v445, %v523
    %v525 = vpop.f32.mrb[0].mxu0
    %526 = vmatprep.mubr.f32.mxu0 0.0
    %527 = vmatmul.mubr.f32.gmra.mrb[0].mxu0 %v421
    %v528 = vpop.f32.mrb[0].mxu0
    %v529 = vadd.f32 %v445, %v528
    %v530 = vpop.f32.mrb[0].mxu0
    %531 = vdwg.mxu0
    %v532 = vmax.f32 %v514, 0.0
    %v533 = vmax.f32 %v519, 0.0
    %v534 = vmax.f32 %v524, 0.0
    %v535 = vmax.f32 %v529, 0.0
    %v536 = vadd.f32 %v346, %v532
    %v537 = vadd.f32 %v347, %v533
    %v538 = vadd.f32 %v348, %v534
    %v539 = vadd.f32 %v349, %v535
    %540 = vst.msk [vmem:[#allocation3] sm:$0xff] %vm166, %v536
    %541 = vst.msk [vmem:[#allocation3 + $0x8] sm:$0xff] %vm166, %v537
    %542 = vst.msk [vmem:[#allocation3 + $0x10] sm:$0xff] %vm166, %v538
    %543 = vst.msk [vmem:[#allocation3 + $0x18] sm:$0xff] %vm166, %v539
    // Predicated region
    $region26: #{tpu_custom_call.1} parent=1 // pred_check
      _
    $region27: #{tpu_custom_call.1} parent=1 // pred_check_branch
      %545 = sbr.rel (0) target = $region29
    $region28: #{tpu_custom_call.1} parent=1 // pred_region
      %s547 = ssub.s32 512, 512
      %548 = vsyncadd [#allocation4], %s547
      %s549 = sshll.u32 [#allocation3], 4
      %s550 = int_to_ptr.vmem [resolvable:$true] %s549
      %555 = dma.vmem_to_hbm [thread:$0]  %s550, 512, %s6, [#allocation4], 128, 128, 8
    $region29: #{tpu_custom_call.1} parent=1 // pred_fallthru
      _
    // Predicated region
    $region30: #{tpu_custom_call.1} parent=1 // pred_check
      _
    $region31: #{tpu_custom_call.1} parent=1 // pred_check_branch
      %557 = sbr.rel (0) target = $region33
    $region32: #{tpu_custom_call.1} parent=1 // pred_region
      %558 = dma.done [#allocation4], 512
    $region33: #{tpu_custom_call.1} parent=1 // pred_fallthru
      _
    %559 = vsyncpa [#allocation4], 1

</llo_original>
